<compile_context>
chip_gen: v6e
topology: v6e:2x2x1
jax: 0.10.0
libtpu: 0.0.40
codegen_flags: <defaults>
</compile_context>

<pallas_src>
import jax
import jax.numpy as jnp
from jax import lax
from jax.experimental import pallas as pl
from jax.experimental.pallas import tpu as pltpu
import numpy as np

LN_EPS = 1e-12


def _round_up(x, m):
    return ((x + m - 1) // m) * m


def _embed_ln_kernel(wid_ref,        # SMEM  (B * S_pad,) int32 token ids (scalar prefetch)
                     pos_ref,        # VMEM  (T, H)       position slab tile
                     tid_ref,        # VMEM  (1, T, 1)    token-type ids for this tile
                     type_tab_ref,   # VMEM  (V, H)       resident token-type table
                     gb_ref,         # VMEM  (2, H)       [gamma; beta]
                     word_hbm,       # ANY   (vocab, H)   word table, stays in HBM
                     out_ref,        # VMEM  (1, T, H)
                     wbuf,           # VMEM scratch (T, H) gathered word rows
                     sem):           # DMA semaphore (1,)
    b = pl.program_id(0)
    t = pl.program_id(1)
    n_t = pl.num_programs(1)
    T = wbuf.shape[0]
    base = (b * n_t + t) * T        # flat token offset into wid_ref

    # ---- word-embedding gather: T concurrent row DMAs HBM -> VMEM scratch ----
    @pl.loop(0, T)
    def _issue(r):
        row = wid_ref[base + r]
        pltpu.make_async_copy(word_hbm.at[row], wbuf.at[r], sem.at[0]).start()

    @pl.loop(0, T)
    def _drain(r):
        # All copies are identical in size and signal the same semaphore; one
        # equal-size wait per issued copy drains them all.
        pltpu.make_async_copy(word_hbm.at[0], wbuf.at[0], sem.at[0]).wait()

    # ---- sum of the three embeddings (f32 accumulation) ----
    x = wbuf[...].astype(jnp.float32) + pos_ref[...].astype(jnp.float32)   # (T, H)

    tids = tid_ref[0]                                  # (T, 1) int32
    V = type_tab_ref.shape[0]                          # static, tiny (typically 2)
    for v in range(V):
        row = type_tab_ref[v:v + 1, :].astype(jnp.float32)           # (1, H)
        x = x + jnp.where(tids == v, 1.0, 0.0) * row                  # (T,1)*(1,H)

    # ---- BertLayerNorm: biased variance over H, eps=1e-12, affine ----
    mean = jnp.mean(x, axis=-1, keepdims=True)
    cent = x - mean
    var = jnp.mean(cent * cent, axis=-1, keepdims=True)
    xn = cent * lax.rsqrt(var + LN_EPS)
    gamma = gb_ref[0:1, :].astype(jnp.float32)
    beta = gb_ref[1:2, :].astype(jnp.float32)
    out_ref[0] = (xn * gamma + beta).astype(out_ref.dtype)


def roberta_embeddings_forward(input_ids, token_type_ids, params, *, seq_tile=128):
    """Pallas forward. input_ids/token_type_ids: (B, S) int32. Returns (B, S, H)."""
    B, S = input_ids.shape
    word_tab = params["word_embeddings"]        # (vocab, H)
    pos_tab = params["position_embeddings"]     # (max_pos, H)
    type_tab = params["token_type_embeddings"]  # (V, H)
    gamma = params["ln_gamma"]
    beta = params["ln_beta"]
    H = word_tab.shape[1]
    V = type_tab.shape[0]

    # Sequence tile: multiple of 8, capped at seq_tile.
    T = min(int(seq_tile), _round_up(S, 8))
    T = max(8, (T // 8) * 8)
    S_pad = _round_up(S, T)
    n_t = S_pad // T
    pad = S_pad - S

    ids_p = jnp.pad(input_ids.astype(jnp.int32), ((0, 0), (0, pad)))
    tid_p = jnp.pad(token_type_ids.astype(jnp.int32), ((0, 0), (0, pad)))

    # Effective positions are arange(S) (BertEmbeddings.forward overwrites the
    # Roberta-offset position_ids), so the position path is a static slab.
    max_pos = pos_tab.shape[0]
    if S_pad <= max_pos:
        pos_slab = pos_tab[:S_pad]
    else:
        pos_slab = jnp.concatenate(
            [pos_tab, jnp.zeros((S_pad - max_pos, H), pos_tab.dtype)], axis=0)

    wid_flat = ids_p.reshape(-1)                 # (B * S_pad,) int32 -> SMEM
    tid3 = tid_p[:, :, None]                     # (B, S_pad, 1)
    gb = jnp.stack([gamma, beta], axis=0)        # (2, H)

    grid_spec = pltpu.PrefetchScalarGridSpec(
        num_scalar_prefetch=1,
        grid=(B, n_t),
        in_specs=[
            pl.BlockSpec((T, H), lambda b, t, wid: (t, 0)),        # position slab tile
            pl.BlockSpec((1, T, 1), lambda b, t, wid: (b, t, 0)),  # token-type ids
            pl.BlockSpec((V, H), lambda b, t, wid: (0, 0)),        # resident type table
            pl.BlockSpec((2, H), lambda b, t, wid: (0, 0)),        # gamma / beta
            pl.BlockSpec(memory_space=pl.ANY),                     # word table (HBM)
        ],
        out_specs=pl.BlockSpec((1, T, H), lambda b, t, wid: (b, t, 0)),
        scratch_shapes=[
            pltpu.VMEM((T, H), word_tab.dtype),     # gathered word rows
            pltpu.SemaphoreType.DMA((1,)),          # shared gather semaphore
        ],
    )

    out = pl.pallas_call(
        _embed_ln_kernel,
        out_shape=jax.ShapeDtypeStruct((B, S_pad, H), word_tab.dtype),
        grid_spec=grid_spec,
        compiler_params=pltpu.CompilerParams(
            dimension_semantics=("parallel", "parallel")),
    )(wid_flat, pos_slab, tid3, type_tab, gb, word_tab)

    # Dropout is identity in eval mode; strip the sequence padding.
    return out[:, :S, :]


def roberta_embeddings_reference(input_ids, token_type_ids, params):
    """Pure-JAX reference of the same forward pass."""
    pos = jnp.arange(input_ids.shape[1], dtype=jnp.int32)
    x = (params["word_embeddings"][input_ids]
         + params["position_embeddings"][pos][None, :, :]
         + params["token_type_embeddings"][token_type_ids])
    mean = x.mean(-1, keepdims=True)
    var = ((x - mean) ** 2).mean(-1, keepdims=True)
    xn = (x - mean) / jnp.sqrt(var + LN_EPS)
    return xn * params["ln_gamma"] + params["ln_beta"]


def init_params(key, vocab_size, hidden_size, max_position_embeddings, type_vocab_size):
    k1, k2, k3, k4 = jax.random.split(key, 4)
    std = 0.02
    word = std * jax.random.normal(k1, (vocab_size, hidden_size), jnp.float32)
    word = word.at[0].set(0.0)  # nn.Embedding(padding_idx=0) zeros row 0 at init
    pos = std * jax.random.normal(k2, (max_position_embeddings, hidden_size), jnp.float32)
    typ = std * jax.random.normal(k3, (type_vocab_size, hidden_size), jnp.float32)
    gamma = 1.0 + 0.1 * jax.random.normal(k4, (hidden_size,), jnp.float32)
    beta = jnp.zeros((hidden_size,), jnp.float32)
    return {
        "word_embeddings": word,
        "position_embeddings": pos,
        "token_type_embeddings": typ,
        "ln_gamma": gamma,
        "ln_beta": beta,
    }


if __name__ == "__main__":
    # Small config consistent with the module's __init__.
    VOCAB = 100
    HIDDEN = 128
    MAX_POS = 64
    TYPE_VOCAB = 2
    B, S = 2, 16
    # TODO(synk): task_specific_tokens concat branch and train-mode dropout RNG not implemented.

    key = jax.random.PRNGKey(0)
    k_params, k_ids, k_tid = jax.random.split(key, 3)
    params = init_params(k_params, VOCAB, HIDDEN, MAX_POS, TYPE_VOCAB)

    input_ids = jax.random.randint(k_ids, (B, S), 2, VOCAB, dtype=jnp.int32)
    token_type_ids = jax.random.randint(k_tid, (B, S), 0, TYPE_VOCAB, dtype=jnp.int32)

    # seq_tile=8 -> 2 sequence tiles per batch row, exercising the full grid.
    out = roberta_embeddings_forward(input_ids, token_type_ids, params, seq_tile=8)
    out = jax.block_until_ready(out)

    ref = roberta_embeddings_reference(input_ids, token_type_ids, params)
    np.testing.assert_allclose(np.asarray(out), np.asarray(ref), atol=1e-5, rtol=1e-5)
    assert out.shape == (B, S, HIDDEN)
    print("KERNEL_OK")
</pallas_src>

<mosaic_0001>
module attributes {stable_mosaic.version = 11 : i64} {
  func.func @_embed_ln_kernel(%arg0: i32, %arg1: i32, %arg2: memref<32xi32, #tpu.memory_space<smem>>, %arg3: memref<8x128xf32, #tpu.memory_space<vmem>>, %arg4: memref<1x8x1xi32, #tpu.memory_space<vmem>>, %arg5: memref<2x128xf32, #tpu.memory_space<vmem>>, %arg6: memref<2x128xf32, #tpu.memory_space<vmem>>, %arg7: memref<100x128xf32, #tpu.memory_space<any>>, %arg8: memref<1x8x128xf32, #tpu.memory_space<vmem>>, %arg9: memref<8x128xf32, #tpu.memory_space<vmem>>, %arg10: memref<1x!tpu.dma_semaphore, #tpu.memory_space<semaphore_mem>>) attributes {dimension_semantics = [#tpu.dimension_semantics<parallel>, #tpu.dimension_semantics<parallel>], iteration_bounds = array<i64: 2, 2>, scalar_prefetch = 1 : i64, scratch_operands = 2 : i64, tpu.core_type = #tpu.core_type<tc>, window_params = [{transform_indices = @transform_0, window_bounds = array<i64: 8, 128>}, {transform_indices = @transform_1, window_bounds = array<i64: 1, 8, 1>}, {pipeline_mode = #tpu.pipeline_mode<synchronous>, transform_indices = @transform_2, window_bounds = array<i64: 2, 128>}, {pipeline_mode = #tpu.pipeline_mode<synchronous>, transform_indices = @transform_3, window_bounds = array<i64: 2, 128>}, {}, {transform_indices = @transform_5, window_bounds = array<i64: 1, 8, 128>}]} {
    %c2_i32 = arith.constant 2 : i32
    %0 = arith.muli %arg0, %c2_i32 : i32
    %1 = arith.addi %0, %arg1 : i32
    %c8_i32 = arith.constant 8 : i32
    %2 = arith.muli %1, %c8_i32 : i32
    %c0_i32 = arith.constant 0 : i32
    %c8_i32_0 = arith.constant 8 : i32
    %3 = arith.addi %c0_i32, %c8_i32_0 : i32
    %c1_i32 = arith.constant 1 : i32
    scf.for %arg11 = %c0_i32 to %3 step %c1_i32  : i32 {
      %c1_i32_31 = arith.constant 1 : i32
      %55 = arith.muli %arg11, %c1_i32_31 : i32
      %c0_i32_32 = arith.constant 0 : i32
      %56 = arith.addi %c0_i32_32, %55 : i32
      %57 = arith.addi %2, %56 : i32
      %58 = arith.index_cast %57 : i32 to index
      %59 = memref.load %arg2[%58] : memref<32xi32, #tpu.memory_space<smem>>
      %c0_i32_33 = arith.constant 0 : i32
      %c0_i32_34 = arith.constant 0 : i32
      %60 = tpu.memref_slice %arg7[%59, %c0_i32_34] : memref<100x128xf32, #tpu.memory_space<any>> -> memref<1x128xf32, #tpu.memory_space<any>>
      %61 = tpu.memref_squeeze %60 : memref<1x128xf32, #tpu.memory_space<any>> -> memref<128xf32, #tpu.memory_space<any>>
      %c0_i32_35 = arith.constant 0 : i32
      %62 = tpu.memref_slice %arg9[%56, %c0_i32_35] : memref<8x128xf32, #tpu.memory_space<vmem>> -> memref<1x128xf32, #tpu.memory_space<vmem>>
      %63 = tpu.memref_squeeze %62 : memref<1x128xf32, #tpu.memory_space<vmem>> -> memref<128xf32, #tpu.memory_space<vmem>>
      %64 = tpu.memref_slice %arg10[%c0_i32_33] : memref<1x!tpu.dma_semaphore, #tpu.memory_space<semaphore_mem>> -> memref<1x!tpu.dma_semaphore, #tpu.memory_space<semaphore_mem>>
      %65 = tpu.memref_squeeze %64 : memref<1x!tpu.dma_semaphore, #tpu.memory_space<semaphore_mem>> -> memref<!tpu.dma_semaphore, #tpu.memory_space<semaphore_mem>>
      tpu.enqueue_dma source(%61 : memref<128xf32, #tpu.memory_space<any>>) target(%63 : memref<128xf32, #tpu.memory_space<vmem>>) target_semaphore(%65 : memref<!tpu.dma_semaphore, #tpu.memory_space<semaphore_mem>>)
    }
    %c8_i32_1 = arith.constant 8 : i32
    %c0_i32_2 = arith.constant 0 : i32
    %c8_i32_3 = arith.constant 8 : i32
    %4 = arith.addi %c0_i32_2, %c8_i32_3 : i32
    %c1_i32_4 = arith.constant 1 : i32
    scf.for %arg11 = %c0_i32_2 to %4 step %c1_i32_4  : i32 {
      %c0_i32_31 = arith.constant 0 : i32
      %c0_i32_32 = arith.constant 0 : i32
      %c0_i32_33 = arith.constant 0 : i32
      %c0_i32_34 = arith.constant 0 : i32
      %55 = tpu.memref_slice %arg7[%c0_i32_31, %c0_i32_34] : memref<100x128xf32, #tpu.memory_space<any>> -> memref<1x128xf32, #tpu.memory_space<any>>
      %56 = tpu.memref_squeeze %55 : memref<1x128xf32, #tpu.memory_space<any>> -> memref<128xf32, #tpu.memory_space<any>>
      %c0_i32_35 = arith.constant 0 : i32
      %57 = tpu.memref_slice %arg9[%c0_i32_32, %c0_i32_35] : memref<8x128xf32, #tpu.memory_space<vmem>> -> memref<1x128xf32, #tpu.memory_space<vmem>>
      %58 = tpu.memref_squeeze %57 : memref<1x128xf32, #tpu.memory_space<vmem>> -> memref<128xf32, #tpu.memory_space<vmem>>
      %59 = tpu.memref_slice %arg10[%c0_i32_33] : memref<1x!tpu.dma_semaphore, #tpu.memory_space<semaphore_mem>> -> memref<1x!tpu.dma_semaphore, #tpu.memory_space<semaphore_mem>>
      %60 = tpu.memref_squeeze %59 : memref<1x!tpu.dma_semaphore, #tpu.memory_space<semaphore_mem>> -> memref<!tpu.dma_semaphore, #tpu.memory_space<semaphore_mem>>
      tpu.wait_dma2 semaphore(%60 : memref<!tpu.dma_semaphore, #tpu.memory_space<semaphore_mem>>) src(%56 : memref<128xf32, #tpu.memory_space<any>>) dst(%58 : memref<128xf32, #tpu.memory_space<vmem>>)
    }
    %c0 = arith.constant 0 : index
    %c0_5 = arith.constant 0 : index
    %5 = vector.load %arg9[%c0, %c0_5] : memref<8x128xf32, #tpu.memory_space<vmem>>, vector<8x128xf32>
    %c0_6 = arith.constant 0 : index
    %c0_7 = arith.constant 0 : index
    %6 = vector.load %arg3[%c0_6, %c0_7] : memref<8x128xf32, #tpu.memory_space<vmem>>, vector<8x128xf32>
    %7 = arith.addf %5, %6 : vector<8x128xf32>
    %c0_8 = arith.constant 0 : index
    %c0_9 = arith.constant 0 : index
    %c0_10 = arith.constant 0 : index
    %8 = vector.load %arg4[%c0_8, %c0_9, %c0_10] : memref<1x8x1xi32, #tpu.memory_space<vmem>>, vector<1x8x1xi32>
    %9 = vector.shape_cast %8 : vector<1x8x1xi32> to vector<8x1xi32>
    %c0_11 = arith.constant 0 : index
    %c0_12 = arith.constant 0 : index
    %10 = vector.load %arg5[%c0_11, %c0_12] : memref<2x128xf32, #tpu.memory_space<vmem>>, vector<1x128xf32>
    %c0_i32_13 = arith.constant 0 : i32
    %11 = vector.broadcast %c0_i32_13 : i32 to vector<8x1xi32>
    %12 = arith.cmpi eq, %9, %11 : vector<8x1xi32>
    %cst = arith.constant 1.000000e+00 : f32
    %cst_14 = arith.constant 0.000000e+00 : f32
    %13 = vector.broadcast %cst : f32 to vector<8x1xf32>
    %14 = vector.broadcast %cst_14 : f32 to vector<8x1xf32>
    %15 = arith.select %12, %13, %14 : vector<8x1xi1>, vector<8x1xf32>
    %16 = vector.broadcast %15 : vector<8x1xf32> to vector<8x128xf32>
    %17 = vector.broadcast %10 : vector<1x128xf32> to vector<8x128xf32>
    %18 = arith.mulf %16, %17 : vector<8x128xf32>
    %19 = arith.addf %7, %18 : vector<8x128xf32>
    %c1 = arith.constant 1 : index
    %c0_15 = arith.constant 0 : index
    %20 = vector.load %arg5[%c1, %c0_15] : memref<2x128xf32, #tpu.memory_space<vmem>>, vector<1x128xf32>
    %c1_i32_16 = arith.constant 1 : i32
    %21 = vector.broadcast %c1_i32_16 : i32 to vector<8x1xi32>
    %22 = arith.cmpi eq, %9, %21 : vector<8x1xi32>
    %cst_17 = arith.constant 1.000000e+00 : f32
    %cst_18 = arith.constant 0.000000e+00 : f32
    %23 = vector.broadcast %cst_17 : f32 to vector<8x1xf32>
    %24 = vector.broadcast %cst_18 : f32 to vector<8x1xf32>
    %25 = arith.select %22, %23, %24 : vector<8x1xi1>, vector<8x1xf32>
    %26 = vector.broadcast %25 : vector<8x1xf32> to vector<8x128xf32>
    %27 = vector.broadcast %20 : vector<1x128xf32> to vector<8x128xf32>
    %28 = arith.mulf %26, %27 : vector<8x128xf32>
    %29 = arith.addf %19, %28 : vector<8x128xf32>
    %cst_19 = arith.constant dense<0.000000e+00> : vector<8xf32>
    %30 = vector.multi_reduction <add>, %29, %cst_19 [1] : vector<8x128xf32> to vector<8xf32>
    %31 = vector.shape_cast %30 : vector<8xf32> to vector<8x1xf32>
    %cst_20 = arith.constant 1.280000e+02 : f32
    %32 = vector.broadcast %cst_20 : f32 to vector<8x1xf32>
    %33 = arith.divf %31, %32 : vector<8x1xf32>
    %34 = vector.broadcast %33 : vector<8x1xf32> to vector<8x128xf32>
    %35 = arith.subf %29, %34 : vector<8x128xf32>
    %36 = arith.mulf %35, %35 : vector<8x128xf32>
    %cst_21 = arith.constant dense<0.000000e+00> : vector<8xf32>
    %37 = vector.multi_reduction <add>, %36, %cst_21 [1] : vector<8x128xf32> to vector<8xf32>
    %38 = vector.shape_cast %37 : vector<8xf32> to vector<8x1xf32>
    %cst_22 = arith.constant 1.280000e+02 : f32
    %39 = vector.broadcast %cst_22 : f32 to vector<8x1xf32>
    %40 = arith.divf %38, %39 : vector<8x1xf32>
    %cst_23 = arith.constant 9.99999996E-13 : f32
    %41 = vector.broadcast %cst_23 : f32 to vector<8x1xf32>
    %42 = arith.addf %40, %41 : vector<8x1xf32>
    %43 = math.rsqrt %42 : vector<8x1xf32>
    %44 = vector.broadcast %43 : vector<8x1xf32> to vector<8x128xf32>
    %45 = arith.mulf %35, %44 : vector<8x128xf32>
    %c0_24 = arith.constant 0 : index
    %c0_25 = arith.constant 0 : index
    %46 = vector.load %arg6[%c0_24, %c0_25] : memref<2x128xf32, #tpu.memory_space<vmem>>, vector<1x128xf32>
    %c1_26 = arith.constant 1 : index
    %c0_27 = arith.constant 0 : index
    %47 = vector.load %arg6[%c1_26, %c0_27] : memref<2x128xf32, #tpu.memory_space<vmem>>, vector<1x128xf32>
    %48 = vector.broadcast %46 : vector<1x128xf32> to vector<8x128xf32>
    %49 = arith.mulf %45, %48 : vector<8x128xf32>
    %50 = vector.broadcast %47 : vector<1x128xf32> to vector<8x128xf32>
    %51 = arith.addf %49, %50 : vector<8x128xf32>
    %c0_28 = arith.constant 0 : index
    %c0_29 = arith.constant 0 : index
    %c0_30 = arith.constant 0 : index
    %52 = vector.load %arg8[%c0_28, %c0_29, %c0_30] : memref<1x8x128xf32, #tpu.memory_space<vmem>>, vector<1x8x128xf32>
    %53 = vector.shape_cast %52 : vector<1x8x128xf32> to vector<8x128xf32>
    %54 = vector.shape_cast %51 : vector<8x128xf32> to vector<1x8x128xf32>
    tpu.vector_store %arg8[%c0_28, %c0_29, %c0_30], %54 {strides = array<i32>} : memref<1x8x128xf32, #tpu.memory_space<vmem>>, vector<1x8x128xf32>,
    return
  }
  func.func @transform_0(%arg0: i32, %arg1: i32, %arg2: memref<32xi32, #tpu.memory_space<smem>>) -> (i32, i32) {
    %c0_i32 = arith.constant 0 : i32
    %c0_i32_0 = arith.constant 0 : i32
    return %arg1, %c0_i32 : i32, i32
  }
  func.func @transform_1(%arg0: i32, %arg1: i32, %arg2: memref<32xi32, #tpu.memory_space<smem>>) -> (i32, i32, i32) {
    %c0_i32 = arith.constant 0 : i32
    %c0_i32_0 = arith.constant 0 : i32
    return %arg0, %arg1, %c0_i32 : i32, i32, i32
  }
  func.func @transform_2(%arg0: i32, %arg1: i32, %arg2: memref<32xi32, #tpu.memory_space<smem>>) -> (i32, i32) {
    %c0_i32 = arith.constant 0 : i32
    %c0_i32_0 = arith.constant 0 : i32
    %c0_i32_1 = arith.constant 0 : i32
    return %c0_i32, %c0_i32_0 : i32, i32
  }
  func.func @transform_3(%arg0: i32, %arg1: i32, %arg2: memref<32xi32, #tpu.memory_space<smem>>) -> (i32, i32) {
    %c0_i32 = arith.constant 0 : i32
    %c0_i32_0 = arith.constant 0 : i32
    %c0_i32_1 = arith.constant 0 : i32
    return %c0_i32, %c0_i32_0 : i32, i32
  }
  func.func @transform_5(%arg0: i32, %arg1: i32, %arg2: memref<32xi32, #tpu.memory_space<smem>>) -> (i32, i32, i32) {
    %c0_i32 = arith.constant 0 : i32
    %c0_i32_0 = arith.constant 0 : i32
    return %arg0, %arg1, %c0_i32 : i32, i32, i32
  }
}

</mosaic_0001>

<llo_original>
// kernel: tpu_custom_call.1
$region0: #{tpu_custom_call.1}
  #allocation0 [shape = 'u32[]', space=smem, size = 0x4, offset = 0x4, fixed_abs, tag = 'smem constant byte address 0x4 - core index']
  #allocation1 [shape = 'u32[144,128]{1,0:T(1,128)}', space=vmem, size = 0x12000, scoped, tag = 'internal scratch']
  #allocation2 [shape = 'f32[8,128]{1,0:T(8,128)}', space=vmem, size = 0x1000, scoped, tag = 'scratch operand']
  #allocation3 [shape = 's32[1]{0}', space=sflag, size = 0x4, scoped, tag = 'scratch operand']
  #allocation4 [shape = 's32[1]{0}', space=sflag, size = 0x4, scoped, tag = 'scoped memory for tpu_custom_call.1']
  #allocation5 [shape = 'u8[512]{0}', space=smem, size = 0x200, scoped, tag = 'prefetched SMEM operand 0']
  #allocation8 [shape = 's32[]', space=sflag, size = 0x4, offset = 0, fixed_abs, tag = 'sflag constant byte address 0x0 - dummy sync flag']
  #allocation9 [shape = 's32[]', space=sflag, size = 0x4, offset = 0, fixed_abs, tag = 'sflag constant byte address 0x0 - dummy sync flag']
  #allocation10 [shape = 'u32[]', space=smem, size = 0x4, offset = 0x44, fixed_abs, tag = 'smem constant byte address 0x44 - assertion arg 0']
  #allocation11 [shape = 'u32[]', space=smem, size = 0x4, offset = 0x48, fixed_abs, tag = 'smem constant byte address 0x48 - assertion arg 1']
  %s0 = inlined_call_operand.vmem [shape: s32[32], index: 0, kind: input, shape index: {}]
  %s1 = inlined_call_operand.vmem [shape: f32[16,128], index: 1, kind: input, shape index: {}]
  %s2 = inlined_call_operand.vmem [shape: s32[2,16,1], index: 2, kind: input, shape index: {}]
  %s3 = inlined_call_operand.vmem [shape: f32[2,128], index: 3, kind: input, shape index: {}]
  %s4 = inlined_call_operand.vmem [shape: f32[2,128], index: 4, kind: input, shape index: {}]
  %s5 = inlined_call_operand.hbm [shape: f32[100,128], index: 5, kind: input, shape index: {}]
  %s6 = inlined_call_operand.hbm [shape: f32[2,16,128], index: 6, kind: output, shape index: {}]
  %s7 = sld [smem:[#allocation0]]
  $region67: #{tpu_custom_call.1} parent=0
    _
  %s9 = ssub.s32 1, %s7
  %s10 = scalar_select 0, %s9, %s7
  %s11 = sshll.u32 %s0, 4
  %s12 = int_to_ptr.vmem [resolvable:$true] %s11
  %14 = dma.vmem_to_smem %s12, 16, [#allocation5], [#allocation4]
  %15 = dma.done [#allocation4], 16
  %16 = sfence
  $region1: #{tpu_custom_call.1} parent=0
    #allocation6 [shape = 'u8[8192]{0}', space=vmem, size = 0x2000, scoped, tag = 'output window, operand 0']
    #allocation7 [shape = 's32[2]{0}', space=sflag, size = 0x8, scoped, tag = 'scoped memory for tpu_custom_call.1']
    %17 = vsyncpa [#allocation7], 0
    %s18 = scalar_lea.sflag [#allocation7], 1
    %19 = vsyncpa %s18, 0
    loop: start=0, step=1, limit=6
    $region2: #{tpu_custom_call.1} parent=1 // loop_pre_header
      _
    $region3: #{tpu_custom_call.1} parent=1 // loop_header
      %s21 = sphi 0, %s25
      %p22 = scmp.ge.s32.totalorder %s21, 6
      %s28 = sphi 0, %s40
      %s29 = sphi 0, %s36
      %s30 = sphi 0, %s28
      %s31 = sphi 0, %s29
      %s32 = sphi 0, %s30
      %s33 = sphi 0, %s31
      %s43 = sphi 0, %s45
      %s46 = sphi 0, %s43
      %s47 = sphi 0, %s46
      %s63 = sphi 0, %s47
      %s71 = sphi 0, %s73
      %s74 = sphi 0, %s71
      %s75 = sphi 0, %s74
      %s91 = sphi 0, %s75
      %s95 = sphi 0, %s95
      %s97 = sphi 0, %s95
      %s98 = sphi 0, %s97
      %s112 = sphi 0, %s98
      %s116 = sphi 0, %s116
      %s118 = sphi 0, %s116
      %s119 = sphi 0, %s118
      %s133 = sphi 0, %s119
      %s141 = sphi 0, %s143
      %s144 = sphi 0, %s141
      %s145 = sphi 0, %s144
      %s161 = sphi 0, %s145
    $region4: #{tpu_custom_call.1} parent=1 // loop_header_branch
      %24 = sbr.rel (%p22) target = $region8
    $region5: #{tpu_custom_call.1} parent=1 // loop_body
      %s26 = ssub.s32 %s21, 1
      %s27 = ssub.s32 %s21, 2
      %s34 = sadd.s32 1, %s29
      %p35 = scmp.ge.s32.totalorder %s34, 2
      %s36 = scalar_select %p35, 0, %s34
      %s37 = sadd.s32 1, %s28
      %s38 = scalar_select %p35, %s37, %s28
      %p39 = scmp.ge.s32.totalorder %s38, 2
      %s40 = scalar_select %p39, 0, %s38
      %s41 = ssub.s32 %s29, %s36
      %p42 = scmp.eq.s32.totalorder %s41, 0
      %s44 = sadd.s32 %s43, 1
      %s45 = scalar_select %p42, %s43, %s44
      %p48 = pneg %p42
      %p49 = scmp.eq.s32.totalorder %s21, 3
      %p50 = por %p48, %p49
      %p51 = scmp.ne.s32.totalorder %s43, %s46
      %p52 = scmp.eq.s32.totalorder %s21, 0
      %p53 = por %p51, %p52
      %p54 = scmp.ne.s32.totalorder %s43, %s46
      %p55 = scmp.eq.s32.totalorder %s26, 3
      %p56 = por %p54, %p55
      %p57 = scmp.ne.s32.totalorder %s46, %s47
      %p58 = scmp.eq.s32.totalorder %s26, 0
      %p59 = por %p57, %p58
      %p60 = scmp.ne.s32.totalorder %s46, %s47
      %p61 = scmp.eq.s32.totalorder %s27, 3
      %p62 = por %p60, %p61
      %p64 = scmp.ne.s32.totalorder %s47, %s63
      %p65 = scmp.eq.s32.totalorder %s27, 0
      %p66 = por %p64, %p65
      %s67 = ssub.s32 %s28, %s40
      %s68 = ssub.s32 %s29, %s36
      %s69 = sor.u32 %s67, %s68
      %p70 = scmp.eq.s32.totalorder %s69, 0
      %s72 = sadd.s32 %s71, 1
      %s73 = scalar_select %p70, %s71, %s72
      %p76 = pneg %p70
      %p77 = scmp.eq.s32.totalorder %s21, 3
      %p78 = por %p76, %p77
      %p79 = scmp.ne.s32.totalorder %s71, %s74
      %p80 = scmp.eq.s32.totalorder %s21, 0
      %p81 = por %p79, %p80
      %p82 = scmp.ne.s32.totalorder %s71, %s74
      %p83 = scmp.eq.s32.totalorder %s26, 3
      %p84 = por %p82, %p83
      %p85 = scmp.ne.s32.totalorder %s74, %s75
      %p86 = scmp.eq.s32.totalorder %s26, 0
      %p87 = por %p85, %p86
      %p88 = scmp.ne.s32.totalorder %s74, %s75
      %p89 = scmp.eq.s32.totalorder %s27, 3
      %p90 = por %p88, %p89
      %p92 = scmp.ne.s32.totalorder %s75, %s91
      %p93 = scmp.eq.s32.totalorder %s27, 0
      %p94 = por %p92, %p93
      %s96 = sadd.s32 %s95, 1
      %p99 = scmp.eq.s32.totalorder %s21, 3
      %p100 = scmp.ne.s32.totalorder %s95, %s97
      %p101 = scmp.eq.s32.totalorder %s21, 0
      %p102 = por %p100, %p101
      %p103 = scmp.ne.s32.totalorder %s95, %s97
      %p104 = scmp.eq.s32.totalorder %s26, 3
      %p105 = por %p103, %p104
      %p106 = scmp.ne.s32.totalorder %s97, %s98
      %p107 = scmp.eq.s32.totalorder %s26, 0
      %p108 = por %p106, %p107
      %p109 = scmp.ne.s32.totalorder %s97, %s98
      %p110 = scmp.eq.s32.totalorder %s27, 3
      %p111 = por %p109, %p110
      %p113 = scmp.ne.s32.totalorder %s98, %s112
      %p114 = scmp.eq.s32.totalorder %s27, 0
      %p115 = por %p113, %p114
      %s117 = sadd.s32 %s116, 1
      %p120 = scmp.eq.s32.totalorder %s21, 3
      %p121 = scmp.ne.s32.totalorder %s116, %s118
      %p122 = scmp.eq.s32.totalorder %s21, 0
      %p123 = por %p121, %p122
      %p124 = scmp.ne.s32.totalorder %s116, %s118
      %p125 = scmp.eq.s32.totalorder %s26, 3
      %p126 = por %p124, %p125
      %p127 = scmp.ne.s32.totalorder %s118, %s119
      %p128 = scmp.eq.s32.totalorder %s26, 0
      %p129 = por %p127, %p128
      %p130 = scmp.ne.s32.totalorder %s118, %s119
      %p131 = scmp.eq.s32.totalorder %s27, 3
      %p132 = por %p130, %p131
      %p134 = scmp.ne.s32.totalorder %s119, %s133
      %p135 = scmp.eq.s32.totalorder %s27, 0
      %p136 = por %p134, %p135
      %s137 = ssub.s32 %s28, %s40
      %s138 = ssub.s32 %s29, %s36
      %s139 = sor.u32 %s137, %s138
      %p140 = scmp.eq.s32.totalorder %s139, 0
      %s142 = sadd.s32 %s141, 1
      %s143 = scalar_select %p140, %s141, %s142
      %p146 = pneg %p140
      %p147 = scmp.eq.s32.totalorder %s21, 3
      %p148 = por %p146, %p147
      %p149 = scmp.ne.s32.totalorder %s141, %s144
      %p150 = scmp.eq.s32.totalorder %s21, 0
      %p151 = por %p149, %p150
      %p152 = scmp.ne.s32.totalorder %s141, %s144
      %p153 = scmp.eq.s32.totalorder %s26, 3
      %p154 = por %p152, %p153
      %p155 = scmp.ne.s32.totalorder %s144, %s145
      %p156 = scmp.eq.s32.totalorder %s26, 0
      %p157 = por %p155, %p156
      %p158 = scmp.ne.s32.totalorder %s144, %s145
      %p159 = scmp.eq.s32.totalorder %s27, 3
      %p160 = por %p158, %p159
      %p162 = scmp.ne.s32.totalorder %s145, %s161
      %p163 = scmp.eq.s32.totalorder %s27, 0
      %p164 = por %p162, %p163
      %p165 = scmp.le.s32.totalorder 1, %s21
      %p166 = scmp.lt.s32.totalorder %s21, 5
      %p167 = pnand %p165, %p166
      %p168 = pneg %p167
      // Predicated region
      $region9: #{tpu_custom_call.1} parent=5 // pred_check
        _
      $region10: #{tpu_custom_call.1} parent=5 // pred_check_branch
        %170 = sbr.rel (%p167) target = $region12
      $region11: #{tpu_custom_call.1} parent=5 // pred_region
        %s171 = ssub.s32 %s21, 1
        // Predicated region
        $region13: #{tpu_custom_call.1} parent=11 // pred_check
          %p172 = pneg %p108
        $region14: #{tpu_custom_call.1} parent=11 // pred_check_branch
          %174 = sbr.rel (%p172) target = $region16
        $region15: #{tpu_custom_call.1} parent=11 // pred_region
          _
        $region16: #{tpu_custom_call.1} parent=11 // pred_fallthru
          _
        // Predicated region
        $region17: #{tpu_custom_call.1} parent=11 // pred_check
          %p175 = pneg %p129
        $region18: #{tpu_custom_call.1} parent=11 // pred_check_branch
          %177 = sbr.rel (%p175) target = $region20
        $region19: #{tpu_custom_call.1} parent=11 // pred_region
          _
        $region20: #{tpu_custom_call.1} parent=11 // pred_fallthru
          _
      $region12: #{tpu_custom_call.1} parent=5 // pred_fallthru
        _
      %p178 = scmp.lt.s32.totalorder %s21, 4
      // Predicated region
      $region21: #{tpu_custom_call.1} parent=5 // pred_check
        %p179 = pneg %p178
      $region22: #{tpu_custom_call.1} parent=5 // pred_check_branch
        %181 = sbr.rel (%p179) target = $region24
      $region23: #{tpu_custom_call.1} parent=5 // pred_region
        // Predicated region
        $region25: #{tpu_custom_call.1} parent=23 // pred_check
          %p182 = pneg %p53
        $region26: #{tpu_custom_call.1} parent=23 // pred_check_branch
          %184 = sbr.rel (%p182) target = $region28
        $region27: #{tpu_custom_call.1} parent=23 // pred_region
          %p185 = scmp.lt.s32.totalorder %s29, 1
          %s186 = scalar_select %p185, %s29, 1
          %s187 = smul.addr %s186, 8
          %s188 = scalar_lea.vmem %s1, %s187
        $region28: #{tpu_custom_call.1} parent=23 // pred_fallthru
          _
        // Predicated region
        $region29: #{tpu_custom_call.1} parent=23 // pred_check
          %p189 = pneg %p81
        $region30: #{tpu_custom_call.1} parent=23 // pred_check_branch
          %191 = sbr.rel (%p189) target = $region32
        $region31: #{tpu_custom_call.1} parent=23 // pred_region
          %p192 = scmp.lt.s32.totalorder %s28, 1
          %s193 = scalar_select %p192, %s28, 1
          %p194 = scmp.lt.s32.totalorder %s29, 1
          %s195 = scalar_select %p194, %s29, 1
          %s196 = smul.addr %s193, 2
          %s197 = sadd.s32 %s195, %s196
          %s198 = smul.addr %s197, 8
          %s199 = scalar_lea.vmem %s2, %s198
        $region32: #{tpu_custom_call.1} parent=23 // pred_fallthru
          _
      $region24: #{tpu_custom_call.1} parent=5 // pred_fallthru
        _
      %p200 = scmp.le.s32.totalorder 1, %s21
      %p201 = scmp.lt.s32.totalorder %s21, 5
      %p202 = pnand %p200, %p201
      %p203 = pneg %p202
      // Predicated region
      $region33: #{tpu_custom_call.1} parent=5 // pred_check
        _
      $region34: #{tpu_custom_call.1} parent=5 // pred_check_branch
        %205 = sbr.rel (%p202) target = $region36
      $region35: #{tpu_custom_call.1} parent=5 // pred_region
        %s206 = ssub.s32 %s21, 1
        %p207 = scmp.lt.s32.totalorder %s31, 1
        %s208 = scalar_select %p207, %s31, 1
        %s209 = smul.addr %s208, 8
        %s210 = scalar_lea.vmem %s1, %s209
        %p211 = pneg %p59
        %p212 = pneg %p56
        %p213 = scmp.lt.s32.totalorder %s30, 1
        %s214 = scalar_select %p213, %s30, 1
        %p215 = scmp.lt.s32.totalorder %s31, 1
        %s216 = scalar_select %p215, %s31, 1
        %s217 = smul.addr %s214, 2
        %s218 = sadd.s32 %s216, %s217
        %s219 = smul.addr %s218, 8
        %s220 = scalar_lea.vmem %s2, %s219
        %p221 = pneg %p87
        %p222 = pneg %p84
        %p223 = pneg %p108
        %p224 = pneg %p105
        %p225 = pneg %p129
        %p226 = pneg %p126
        %p227 = pneg %p157
        %p228 = pneg %p154
        %s229 = sand.u32 %s144, 1
        %s230 = scalar_lea.sflag [#allocation7], %s229
        %s231 = sand.u32 %s144, 1
        %s232 = smul.addr %s231, 8
        %s233 = scalar_lea.vmem [#allocation6], %s232
        %p234 = scmp.lt.s32.totalorder %s31, 1
        %s235 = scalar_select %p234, %s31, 1
        %s236 = smul.addr %s235, 8
        %s237 = scalar_lea.vmem %s1, %s236
        %p238 = scmp.lt.s32.totalorder %s30, 1
        %s239 = scalar_select %p238, %s30, 1
        %p240 = scmp.lt.s32.totalorder %s31, 1
        %s241 = scalar_select %p240, %s31, 1
        %s242 = smul.addr %s239, 2
        %s243 = sadd.s32 %s241, %s242
        %s244 = smul.addr %s243, 8
        %s245 = scalar_lea.vmem %s2, %s244
        %s246 = smul.u32 %s30, 2
        %s247 = sadd.s32 %s246, %s31
        %s248 = smul.u32 %s247, 8
        loop: start=0, step=1, limit=8
        $region37: #{tpu_custom_call.1} parent=35 // loop_pre_header
          _
        $region38: #{tpu_custom_call.1} parent=35 // loop_header
          %s250 = sphi 0, %s254
          %p251 = scmp.ge.s32.totalorder %s250, 8
        $region39: #{tpu_custom_call.1} parent=35 // loop_header_branch
          %253 = sbr.rel (%p251) target = $region43
        $region40: #{tpu_custom_call.1} parent=35 // loop_body
          %s255 = sadd.s32 %s248, %s250
          %s256 = sld [smem:[#allocation5 + %s255]]
          %s257 = smul.addr %s256, 16
          %s258 = scalar_lea.hbm %s5, %s257
          %s259 = scalar_lea.vmem [#allocation2], %s250
          // Predicated region
          $region44: #{tpu_custom_call.1} parent=40 // pred_check
            _
          $region45: #{tpu_custom_call.1} parent=40 // pred_check_branch
            %261 = sbr.rel target = $region47
          $region46: #{tpu_custom_call.1} parent=40 // pred_region
            %262 = sst [smem:[#allocation10]] [#allocation9]
            %263 = sst [smem:[#allocation11]] [#allocation8]
          $region47: #{tpu_custom_call.1} parent=40 // pred_fallthru
            _
          %265 = shalt.err (0)
          %s267 = sshll.u32 %s259, 4
          %s268 = int_to_ptr.vmem [resolvable:$true] %s267
          %270 = dma.hbm_to_vmem [thread:$0]  %s258, 16, %s268, [#allocation3]
        $region41: #{tpu_custom_call.1} parent=35 // loop_footer
          %s254 = sadd.s32 1, %s250
        $region42: #{tpu_custom_call.1} parent=35 // loop_footer_branch
          %249 = sbr.rel target = $region38
        $region43: #{tpu_custom_call.1} parent=35 // loop_exit
          _
        loop: start=0, step=1, limit=8
        $region48: #{tpu_custom_call.1} parent=35 // loop_pre_header
          _
        $region49: #{tpu_custom_call.1} parent=35 // loop_header
          %s272 = sphi 0, %s276
          %p273 = scmp.ge.s32.totalorder %s272, 8
        $region50: #{tpu_custom_call.1} parent=35 // loop_header_branch
          %275 = sbr.rel (%p273) target = $region54
        $region51: #{tpu_custom_call.1} parent=35 // loop_body
          %278 = dma.done [#allocation3], 16
        $region52: #{tpu_custom_call.1} parent=35 // loop_footer
          %s276 = sadd.s32 1, %s272
        $region53: #{tpu_custom_call.1} parent=35 // loop_footer_branch
          %271 = sbr.rel target = $region49
        $region54: #{tpu_custom_call.1} parent=35 // loop_exit
          _
        %v279 = vld [vmem:[#allocation2] sm:$0xff]
        %v280 = vld [vmem:[%s237] sm:$0xff]
        %v281 = vadd.f32 %v279, %v280
        %v282 = vld [vmem:[%s245] sm:$0xff]
        %v283 = vld [vmem:[%s3] sm:$0x1]
        %vm284 = vcmp.eq.s32.totalorder %v282, 0
        %v285 = vsel %vm284, 1.0, 0.0
        %287 = vset.pattern.permute.xlu0 0
        %288 = vperm.xlu0 %287, %v285
        %v289 = vpop.permute.xlu0 %288
        %v291 = vlaneseq
        %v292 = vshrl.u32 %v291, 7
        %v293 = vsub.s32 0, %v292
        %v294 = vrot.slane %v283, %v293
        %v295 = vmul.f32 %v289, %v294
        %v296 = vadd.f32 %v281, %v295
        %v297 = vld [vmem:[%s3 + $0x1] sm:$0x1]
        %vm298 = vcmp.eq.s32.totalorder %v282, 1
        %v299 = vsel %vm298, 1.0, 0.0
        %301 = vset.pattern.permute.xlu0 0
        %302 = vperm.xlu0 %301, %v299
        %v303 = vpop.permute.xlu0 %302
        %v305 = vlaneseq
        %v306 = vshrl.u32 %v305, 7
        %v307 = vsub.s32 0, %v306
        %v308 = vrot.slane %v297, %v307
        %v309 = vmul.f32 %v303, %v308
        %v310 = vadd.f32 %v296, %v309
        %311 = vadd.xlane.f32.xlu0 %v310
        %v312 = vpop.xlane.xlu0 %311
        %v313 = vrcp.pop 128.0
        %v314 = vmul.f32 %v312, %v313
        %v315 = vsub.f32 %v310, %v314
        %v316 = vmul.f32 %v315, %v315
        %317 = vadd.xlane.f32.xlu0 %v316
        %v318 = vpop.xlane.xlu0 %317
        %v319 = vmul.f32 %v318, %v313
        %v320 = vadd.f32 %v319, 1e-12
        %v321 = vrsqrt.pop %v320
        %v322 = vmul.f32 %v315, %v321
        %v323 = vld [vmem:[%s4] sm:$0x1]
        %v324 = vld [vmem:[%s4 + $0x1] sm:$0x1]
        %v325 = vlaneseq
        %v326 = vshrl.u32 %v325, 7
        %v327 = vsub.s32 0, %v326
        %v328 = vrot.slane %v323, %v327
        %v329 = vmul.f32 %v322, %v328
        %v330 = vlaneseq
        %v331 = vshrl.u32 %v330, 7
        %v332 = vsub.s32 0, %v331
        %v333 = vrot.slane %v324, %v332
        %v334 = vadd.f32 %v329, %v333
        %335 = vst [vmem:[%s233] sm:$0xff] %v334
        %s336 = sand.u32 %s144, 1
        %s337 = scalar_lea.sflag [#allocation7], %s336
        %s338 = sand.u32 %s144, 1
        %s339 = smul.addr %s338, 8
        %s340 = scalar_lea.vmem [#allocation6], %s339
        // Predicated region
        $region55: #{tpu_custom_call.1} parent=35 // pred_check
          %p341 = pneg %p154
        $region56: #{tpu_custom_call.1} parent=35 // pred_check_branch
          %343 = sbr.rel (%p341) target = $region58
        $region57: #{tpu_custom_call.1} parent=35 // pred_region
          %s345 = ssub.s32 128, 128
          %346 = vsyncadd %s337, %s345
          %s347 = smul.addr %s30, 2
          %s348 = sadd.s32 %s31, %s347
          %s349 = smul.addr %s348, 128
          %s350 = scalar_lea.hbm %s6, %s349
          %s352 = sshll.u32 %s340, 4
          %s353 = int_to_ptr.vmem [resolvable:$true] %s352
          %355 = dma.vmem_to_hbm [thread:$0]  %s353, 128, %s350, %s337
        $region58: #{tpu_custom_call.1} parent=35 // pred_fallthru
          _
      $region36: #{tpu_custom_call.1} parent=5 // pred_fallthru
        _
      %p356 = scmp.le.s32.totalorder 2, %s21
      // Predicated region
      $region59: #{tpu_custom_call.1} parent=5 // pred_check
        %p357 = pneg %p356
      $region60: #{tpu_custom_call.1} parent=5 // pred_check_branch
        %359 = sbr.rel (%p357) target = $region62
      $region61: #{tpu_custom_call.1} parent=5 // pred_region
        %s360 = ssub.s32 %s21, 2
        // Predicated region
        $region63: #{tpu_custom_call.1} parent=61 // pred_check
          %p361 = pneg %p160
        $region64: #{tpu_custom_call.1} parent=61 // pred_check_branch
          %363 = sbr.rel (%p361) target = $region66
        $region65: #{tpu_custom_call.1} parent=61 // pred_region
          %s364 = sand.u32 %s145, 1
          %s365 = scalar_lea.sflag [#allocation7], %s364
          %s366 = sand.u32 %s145, 1
          %s367 = smul.addr %s366, 8
          %s368 = scalar_lea.vmem [#allocation6], %s367
          %369 = dma.done %s365, 128
        $region66: #{tpu_custom_call.1} parent=61 // pred_fallthru
          _
      $region62: #{tpu_custom_call.1} parent=5 // pred_fallthru
        _
    $region6: #{tpu_custom_call.1} parent=1 // loop_footer
      %s25 = sadd.s32 1, %s21
    $region7: #{tpu_custom_call.1} parent=1 // loop_footer_branch
      %20 = sbr.rel target = $region3
    $region8: #{tpu_custom_call.1} parent=1 // loop_exit
      _
    %370 = vsyncpa [#allocation7], 1
    %s371 = scalar_lea.sflag [#allocation7], 1
    %372 = vsyncpa %s371, 1
  %373 = vsyncmov [#allocation3]
  %s374 = vpop.sfrf %373
  %p375 = scmp.eq.s32.totalorder %s374, 0
  %p376 = pneg %p375
  %378 = shalt.err (%p376)

</llo_original>
